<compile_context>
chip_gen: v7x
topology: tpu7x:2x2x1
jax: 0.10.0
libtpu: 0.0.40
codegen_flags: <defaults>
</compile_context>

<pallas_src>
import functools

import jax
import jax.numpy as jnp
from jax.experimental import pallas as pl
from jax.experimental.pallas import tpu as pltpu


def _metrics_kernel(pred_ref, targ_ref, stats_ref, *, top_percent):
    # pred_ref / targ_ref: (TB, H*W) tiles in VMEM; one sample per row.
    pred = pred_ref[...].astype(jnp.float32)
    targ = targ_ref[...].astype(jnp.float32)

    # MAE numerator: per-sample sum of |pred - target| (f32 accumulation).
    absum = jnp.sum(jnp.abs(pred - targ), axis=-1, keepdims=True)

    # Per-sample threshold from the *target* max (matches forward_max; the
    # pred-based threshold is computed but unused in the PyTorch module).
    thr = jnp.max(targ, axis=-1, keepdims=True) * top_percent

    # Float masks directly from the compares (no bool&/where selects).
    th_f = (targ >= thr).astype(jnp.float32)   # target hotspot
    ph_f = (pred >= thr).astype(jnp.float32)   # pred hotspot

    tp = jnp.sum(th_f * ph_f, axis=-1, keepdims=True)
    sp = jnp.sum(ph_f, axis=-1, keepdims=True)
    st = jnp.sum(th_f, axis=-1, keepdims=True)

    # Packed stats: one output stream / one output DMA per step.
    stats_ref[:, 0:1] = absum
    stats_ref[:, 1:2] = tp
    stats_ref[:, 2:3] = sp
    stats_ref[:, 3:4] = st


def _pick_vmem_limit():
    """Per-chip scoped-VMEM limit: half of physical, capped at 64 MiB."""
    phys = 64 * 1024 * 1024  # conservative fallback (v7x physical)
    try:
        info = pltpu.get_tpu_info()
        phys = int(getattr(info, "vmem_capacity_bytes", phys))
    except Exception:
        pass
    return int(min(phys // 2, 64 * 1024 * 1024))


def _choose_tb(B, HW, in_itemsize, vmem_limit):
    """Pick the batch tile (rows) by bytes, counting in-kernel temporaries.

    Per batch-row of a block:
      inputs:      2 arrays x 2 pipeline buffers x HW x itemsize
      temporaries: ~4 tile-sized f32 intermediates (f32 casts, |diff|, masks)
    """
    bytes_per_row = 2 * 2 * HW * in_itemsize + 4 * HW * 4
    budget = int(vmem_limit * 0.85)
    max_rows = budget // bytes_per_row
    if max_rows < 1 or (B > max_rows and max_rows < 8):
        # TODO(synk): image-tiling (H*W reduction) grid axis for huge images.
        raise NotImplementedError(
            f"image block of {HW} elements does not fit the VMEM budget "
            f"({vmem_limit} bytes); H*W tiling not implemented")
    if B <= max_rows:
        return B  # single grid step, full-extent block (legal even if B < 8)
    return (min(B, max_rows) // 8) * 8  # multiple of 8, as large as budget allows


def ir_drop_metrics(pred, target, *, top_percent=0.9, post_min_max=False,
                    eps=1e-6):
    """JAX/Pallas equivalent of IRDropMetrics.compute_metrics (how='max').

    pred, target: (B, 1, H, W) float32/bf16 (NCHW, C must be 1).
    Returns dict with scalar 'mae' and 'f1' (jnp scalars).
    """
    if post_min_max:
        # Global min-max normalization of pred, matching min_max_norm(pred).
        pred = (pred - pred.min()) / (pred.max() - pred.min())

    B, C, H, W = pred.shape
    assert C == 1, "This implementation is for binary segmentation"
    HW = H * W
    # f32 count accumulation is exact only up to 2^24 elements per sample.
    assert HW < (1 << 24), "H*W too large for exact f32 count accumulation"

    # Lane-dense layout: one sample per row, full image along lanes.
    p = pred.reshape(B, HW)
    t = target.reshape(B, HW)

    vmem_limit = _pick_vmem_limit()
    TB = _choose_tb(B, HW, p.dtype.itemsize, vmem_limit)
    grid_b = pl.cdiv(B, TB)  # ragged last block OK: no jnp.pad HBM round-trip

    kernel = functools.partial(_metrics_kernel, top_percent=float(top_percent))

    stats = pl.pallas_call(
        kernel,
        out_shape=jax.ShapeDtypeStruct((B, 4), jnp.float32),
        grid_spec=pltpu.PrefetchScalarGridSpec(
            num_scalar_prefetch=0,
            grid=(grid_b,),
            in_specs=[
                pl.BlockSpec((TB, HW), lambda b: (b, 0)),
                pl.BlockSpec((TB, HW), lambda b: (b, 0)),
            ],
            out_specs=pl.BlockSpec((TB, 4), lambda b: (b, 0)),
        ),
        compiler_params=pltpu.CompilerParams(
            dimension_semantics=("parallel",),
            vmem_limit_bytes=vmem_limit,
        ),
    )(p, t)

    # Finish the tiny per-sample scalar math in plain JAX.
    absum = stats[:, 0]
    tp = stats[:, 1]
    fp = stats[:, 2] - tp
    fn = stats[:, 3] - tp

    mae = jnp.sum(absum) / jnp.float32(B * H * W)
    precision = tp / (tp + fp + eps)
    recall = tp / (tp + fn + eps)
    f1 = 2.0 * precision * recall / (precision + recall + eps)
    return {"mae": mae, "f1": jnp.mean(f1)}


def _reference(pred, target, top_percent=0.9, eps=1e-6):
    """Pure-JAX reference mirroring the PyTorch forward_max."""
    B, C, H, W = pred.shape
    p = pred.reshape(B, H, W).astype(jnp.float32)
    t = target.reshape(B, H, W).astype(jnp.float32)
    mae = jnp.mean(jnp.abs(p - t))
    max_t = t.reshape(B, -1).max(axis=1).reshape(B, 1, 1)
    thr = max_t * top_percent
    th = (t >= thr).astype(jnp.float32)
    ph = (p >= thr).astype(jnp.float32)
    tp = (th * ph).sum(axis=(1, 2))
    fp = ((1 - th) * ph).sum(axis=(1, 2))
    fn = (th * (1 - ph)).sum(axis=(1, 2))
    precision = tp / (tp + fp + eps)
    recall = tp / (tp + fn + eps)
    f1 = 2 * precision * recall / (precision + recall + eps)
    return mae, f1.mean()


if __name__ == "__main__":
    key = jax.random.PRNGKey(0)
    k1, k2 = jax.random.split(key)
    B, C, H, W = 2, 1, 16, 16
    pred = jax.random.uniform(k1, (B, C, H, W), dtype=jnp.float32)
    target = jax.random.uniform(k2, (B, C, H, W), dtype=jnp.float32)

    out = ir_drop_metrics(pred, target, top_percent=0.9)
    mae = jax.block_until_ready(out["mae"])
    f1 = jax.block_until_ready(out["f1"])

    ref_mae, ref_f1 = _reference(pred, target)
    assert jnp.allclose(mae, ref_mae, atol=1e-5, rtol=1e-5), (mae, ref_mae)
    assert jnp.allclose(f1, ref_f1, atol=1e-5, rtol=1e-5), (f1, ref_f1)

    print("KERNEL_OK")
</pallas_src>

<mosaic_0001>
module attributes {stable_mosaic.version = 11 : i64} {
  func.func @_metrics_kernel(%arg0: i32, %arg1: memref<2x256xf32, #tpu.memory_space<vmem>>, %arg2: memref<2x256xf32, #tpu.memory_space<vmem>>, %arg3: memref<2x4xf32, #tpu.memory_space<vmem>>) attributes {dimension_semantics = [#tpu.dimension_semantics<parallel>], iteration_bounds = array<i64: 1>, scalar_prefetch = 0 : i64, scratch_operands = 0 : i64, tpu.core_type = #tpu.core_type<tc>, window_params = [{transform_indices = @transform_0, window_bounds = array<i64: 2, 256>}, {transform_indices = @transform_1, window_bounds = array<i64: 2, 256>}, {transform_indices = @transform_2, window_bounds = array<i64: 2, 4>}]} {
    %c0 = arith.constant 0 : index
    %c0_0 = arith.constant 0 : index
    %0 = vector.load %arg1[%c0, %c0_0] : memref<2x256xf32, #tpu.memory_space<vmem>>, vector<2x256xf32>
    %c0_1 = arith.constant 0 : index
    %c0_2 = arith.constant 0 : index
    %1 = vector.load %arg2[%c0_1, %c0_2] : memref<2x256xf32, #tpu.memory_space<vmem>>, vector<2x256xf32>
    %2 = arith.subf %0, %1 : vector<2x256xf32>
    %3 = math.absf %2 : vector<2x256xf32>
    %cst = arith.constant dense<0.000000e+00> : vector<2xf32>
    %4 = vector.multi_reduction <add>, %3, %cst [1] : vector<2x256xf32> to vector<2xf32>
    %5 = vector.shape_cast %4 : vector<2xf32> to vector<2x1xf32>
    %cst_3 = arith.constant dense<0xFF800000> : vector<2xf32>
    %6 = vector.multi_reduction <maximumf>, %1, %cst_3 [1] : vector<2x256xf32> to vector<2xf32>
    %7 = vector.shape_cast %6 : vector<2xf32> to vector<2x1xf32>
    %cst_4 = arith.constant 0.899999976 : f32
    %8 = vector.broadcast %cst_4 : f32 to vector<2x1xf32>
    %9 = arith.mulf %7, %8 : vector<2x1xf32>
    %10 = vector.broadcast %9 : vector<2x1xf32> to vector<2x256xf32>
    %11 = arith.cmpf oge, %1, %10 : vector<2x256xf32>
    %12 = arith.extui %11 : vector<2x256xi1> to vector<2x256xi32>
    %13 = arith.sitofp %12 : vector<2x256xi32> to vector<2x256xf32>
    %14 = vector.broadcast %9 : vector<2x1xf32> to vector<2x256xf32>
    %15 = arith.cmpf oge, %0, %14 : vector<2x256xf32>
    %16 = arith.extui %15 : vector<2x256xi1> to vector<2x256xi32>
    %17 = arith.sitofp %16 : vector<2x256xi32> to vector<2x256xf32>
    %18 = arith.mulf %13, %17 : vector<2x256xf32>
    %cst_5 = arith.constant dense<0.000000e+00> : vector<2xf32>
    %19 = vector.multi_reduction <add>, %18, %cst_5 [1] : vector<2x256xf32> to vector<2xf32>
    %20 = vector.shape_cast %19 : vector<2xf32> to vector<2x1xf32>
    %cst_6 = arith.constant dense<0.000000e+00> : vector<2xf32>
    %21 = vector.multi_reduction <add>, %17, %cst_6 [1] : vector<2x256xf32> to vector<2xf32>
    %22 = vector.shape_cast %21 : vector<2xf32> to vector<2x1xf32>
    %cst_7 = arith.constant dense<0.000000e+00> : vector<2xf32>
    %23 = vector.multi_reduction <add>, %13, %cst_7 [1] : vector<2x256xf32> to vector<2xf32>
    %24 = vector.shape_cast %23 : vector<2xf32> to vector<2x1xf32>
    %c0_8 = arith.constant 0 : index
    %c0_9 = arith.constant 0 : index
    %25 = vector.load %arg3[%c0_8, %c0_9] : memref<2x4xf32, #tpu.memory_space<vmem>>, vector<2x1xf32>
    tpu.vector_store %arg3[%c0_8, %c0_9], %5 {strides = array<i32>} : memref<2x4xf32, #tpu.memory_space<vmem>>, vector<2x1xf32>,
    %c0_10 = arith.constant 0 : index
    %c1 = arith.constant 1 : index
    %26 = vector.load %arg3[%c0_10, %c1] : memref<2x4xf32, #tpu.memory_space<vmem>>, vector<2x1xf32>
    tpu.vector_store %arg3[%c0_10, %c1], %20 {strides = array<i32>} : memref<2x4xf32, #tpu.memory_space<vmem>>, vector<2x1xf32>,
    %c0_11 = arith.constant 0 : index
    %c2 = arith.constant 2 : index
    %27 = vector.load %arg3[%c0_11, %c2] : memref<2x4xf32, #tpu.memory_space<vmem>>, vector<2x1xf32>
    tpu.vector_store %arg3[%c0_11, %c2], %22 {strides = array<i32>} : memref<2x4xf32, #tpu.memory_space<vmem>>, vector<2x1xf32>,
    %c0_12 = arith.constant 0 : index
    %c3 = arith.constant 3 : index
    %28 = vector.load %arg3[%c0_12, %c3] : memref<2x4xf32, #tpu.memory_space<vmem>>, vector<2x1xf32>
    tpu.vector_store %arg3[%c0_12, %c3], %24 {strides = array<i32>} : memref<2x4xf32, #tpu.memory_space<vmem>>, vector<2x1xf32>,
    return
  }
  func.func @transform_0(%arg0: i32) -> (i32, i32) {
    %c0_i32 = arith.constant 0 : i32
    %c0_i32_0 = arith.constant 0 : i32
    return %arg0, %c0_i32 : i32, i32
  }
  func.func @transform_1(%arg0: i32) -> (i32, i32) {
    %c0_i32 = arith.constant 0 : i32
    %c0_i32_0 = arith.constant 0 : i32
    return %arg0, %c0_i32 : i32, i32
  }
  func.func @transform_2(%arg0: i32) -> (i32, i32) {
    %c0_i32 = arith.constant 0 : i32
    %c0_i32_0 = arith.constant 0 : i32
    return %arg0, %c0_i32 : i32, i32
  }
}

</mosaic_0001>

<llo_original>
// kernel: tpu_custom_call.1
$region0: #{tpu_custom_call.1}
  #allocation0 [shape = 'u32[]', space=smem, size = 0x4, offset = 0x4, fixed_abs, tag = 'smem constant byte address 0x4 - core index']
  #allocation1 [shape = 'u32[144,128]{1,0:T(1,128)}', space=vmem, size = 0x12000, scoped, tag = 'internal scratch']
  %s0 = inlined_call_operand.hbm [shape: f32[2,256], index: 0, kind: input, shape index: {}]
  %s1 = inlined_call_operand.hbm [shape: f32[2,256], index: 1, kind: input, shape index: {}]
  %s2 = inlined_call_operand.hbm [shape: f32[2,4], index: 2, kind: output, shape index: {}]
  %s3 = sld [smem:[#allocation0]]
  $region26: #{tpu_custom_call.1} parent=0
    _
  %s5 = ssub.s32 1, %s3
  %s6 = scalar_select 0, %s5, %s3
  $region1: #{tpu_custom_call.1} parent=0
    #allocation2 [shape = 'u8[2048]{0}', space=vmem, size = 0x800, scoped, tag = 'input window, operand 0, single buffered']
    #allocation3 [shape = 's32[1]{0}', space=sflag, size = 0x4, scoped, tag = 'scoped memory for tpu_custom_call.1']
    #allocation4 [shape = 's32[1]{0}', space=sflag, size = 0x4, scoped, tag = 'scoped memory for tpu_custom_call.1']
    #allocation5 [shape = 'u8[2048]{0}', space=vmem, size = 0x800, scoped, tag = 'input window, operand 1, single buffered']
    #allocation6 [shape = 's32[1]{0}', space=sflag, size = 0x4, scoped, tag = 'scoped memory for tpu_custom_call.1']
    #allocation7 [shape = 'u8[1024]{0}', space=vmem, size = 0x400, scoped, tag = 'output window, operand 0, single buffered']
    %7 = vsyncpa [#allocation3], 0
    %8 = vsyncpa [#allocation6], 0
    %9 = vsyncpa [#allocation4], 0
    // Predicated region
    $region2: #{tpu_custom_call.1} parent=1 // pred_check
      _
    $region3: #{tpu_custom_call.1} parent=1 // pred_check_branch
      %11 = sbr.rel (0) target = $region5
    $region4: #{tpu_custom_call.1} parent=1 // pred_region
      %s13 = ssub.s32 64, 64
      %14 = vsyncadd [#allocation3], %s13
      %s16 = sshll.u32 [#allocation2], 4
      %s17 = int_to_ptr.vmem [resolvable:$true] %s16
      %19 = dma.hbm_to_vmem [thread:$0]  %s0, 64, %s17, [#allocation3]
    $region5: #{tpu_custom_call.1} parent=1 // pred_fallthru
      _
    // Predicated region
    $region6: #{tpu_custom_call.1} parent=1 // pred_check
      _
    $region7: #{tpu_custom_call.1} parent=1 // pred_check_branch
      %21 = sbr.rel (0) target = $region9
    $region8: #{tpu_custom_call.1} parent=1 // pred_region
      %s23 = ssub.s32 64, 64
      %24 = vsyncadd [#allocation6], %s23
      %s26 = sshll.u32 [#allocation5], 4
      %s27 = int_to_ptr.vmem [resolvable:$true] %s26
      %29 = dma.hbm_to_vmem [thread:$0]  %s1, 64, %s27, [#allocation6]
    $region9: #{tpu_custom_call.1} parent=1 // pred_fallthru
      _
    // Predicated region
    $region10: #{tpu_custom_call.1} parent=1 // pred_check
      _
    $region11: #{tpu_custom_call.1} parent=1 // pred_check_branch
      %31 = sbr.rel (0) target = $region13
    $region12: #{tpu_custom_call.1} parent=1 // pred_region
      %32 = dma.done [#allocation3], 64
    $region13: #{tpu_custom_call.1} parent=1 // pred_fallthru
      _
    // Predicated region
    $region14: #{tpu_custom_call.1} parent=1 // pred_check
      _
    $region15: #{tpu_custom_call.1} parent=1 // pred_check_branch
      %34 = sbr.rel (0) target = $region17
    $region16: #{tpu_custom_call.1} parent=1 // pred_region
      %35 = dma.done [#allocation6], 64
    $region17: #{tpu_custom_call.1} parent=1 // pred_fallthru
      _
    %v36 = vld [vmem:[#allocation2] sm:$0xf]
    %v37 = vld [vmem:[#allocation5] sm:$0xf]
    %v38 = vsub.f32 %v36, %v37
    %v39 = vand.u32 2147483647, %v38
    %v42 = vunpack.c.l.s4 1983009808
    %v43 = vunpack.c.0.s8 %v42
    %v44 = vlaneseq
    %v45 = vshrl.u32 %v44, 7
    %v46 = vsub.s32 %v43, %v45
    %v47 = vrot.slane %v39, %v46
    %v48 = vcombine.high %v47, %v47
    %vm51 = vcmask 1041408
    %v52 = vsel %vm51, %v47, 0.0
    %v53 = vsel %vm51, %v48, 0.0
    %v54 = vadd.f32 %v52, %v53
    %55 = vadd.xlane.f32.xlu0 %v54
    %v56 = vpop.xlane.xlu0 %55
    %v59 = vunpack.c.l.s4 1983009808
    %v60 = vunpack.c.0.s8 %v59
    %v61 = vlaneseq
    %v62 = vshrl.u32 %v61, 7
    %v63 = vsub.s32 %v60, %v62
    %v64 = vrot.slane %v37, %v63
    %v65 = vcombine.high %v64, %v64
    %v68 = vsel %vm51, %v64, -inf
    %v69 = vsel %vm51, %v65, -inf
    %v70 = vmax.f32 %v68, %v69
    %71 = vmax.xlane.f32.xlu0 %v70
    %v72 = vpop.xlane.xlu0 %71
    %v73 = vmul.f32 %v72, 0.9
    %v76 = vunpack.c.l.s4 269488144
    %v77 = vunpack.c.0.s8 %v76
    %v78 = vlaneseq
    %v79 = vshrl.u32 %v78, 7
    %v80 = vsub.s32 %v77, %v79
    %v81 = vrot.slane %v73, %v80
    %vm83 = vcmp.ge.f32.partialorder %v37, %v81
    %v84 = vsel %vm83, 1, 0
    %v85 = vcvt.s32.f32 %v84
    %vm86 = vcmp.ge.f32.partialorder %v36, %v81
    %v87 = vsel %vm86, 1, 0
    %v88 = vcvt.s32.f32 %v87
    %v89 = vmul.f32 %v85, %v88
    %v92 = vunpack.c.l.s4 1983009808
    %v93 = vunpack.c.0.s8 %v92
    %v94 = vlaneseq
    %v95 = vshrl.u32 %v94, 7
    %v96 = vsub.s32 %v93, %v95
    %v97 = vrot.slane %v89, %v96
    %v98 = vcombine.high %v97, %v97
    %v101 = vsel %vm51, %v97, 0.0
    %v102 = vsel %vm51, %v98, 0.0
    %v103 = vadd.f32 %v101, %v102
    %104 = vadd.xlane.f32.xlu0 %v103
    %v105 = vpop.xlane.xlu0 %104
    %v108 = vunpack.c.l.s4 1983009808
    %v109 = vunpack.c.0.s8 %v108
    %v110 = vlaneseq
    %v111 = vshrl.u32 %v110, 7
    %v112 = vsub.s32 %v109, %v111
    %v113 = vrot.slane %v88, %v112
    %v114 = vcombine.high %v113, %v113
    %v117 = vsel %vm51, %v113, 0.0
    %v118 = vsel %vm51, %v114, 0.0
    %v119 = vadd.f32 %v117, %v118
    %120 = vadd.xlane.f32.xlu0 %v119
    %v121 = vpop.xlane.xlu0 %120
    %v124 = vunpack.c.l.s4 1983009808
    %v125 = vunpack.c.0.s8 %v124
    %v126 = vlaneseq
    %v127 = vshrl.u32 %v126, 7
    %v128 = vsub.s32 %v125, %v127
    %v129 = vrot.slane %v85, %v128
    %v130 = vcombine.high %v129, %v129
    %v133 = vsel %vm51, %v129, 0.0
    %v134 = vsel %vm51, %v130, 0.0
    %v135 = vadd.f32 %v133, %v134
    %136 = vadd.xlane.f32.xlu0 %v135
    %v137 = vpop.xlane.xlu0 %136
    %vm138 = vcmask 1024
    %139 = vst.msk [vmem:[#allocation7] sm:$0x3] %vm138, %v56
    %vm140 = vcmask 9224
    %141 = vst.msk [vmem:[#allocation7] sm:$0x3] %vm140, %v105
    %vm142 = vcmask 17424
    %143 = vst.msk [vmem:[#allocation7] sm:$0x3] %vm142, %v121
    %vm144 = vcmask 25624
    %145 = vst.msk [vmem:[#allocation7] sm:$0x3] %vm144, %v137
    // Predicated region
    $region18: #{tpu_custom_call.1} parent=1 // pred_check
      _
    $region19: #{tpu_custom_call.1} parent=1 // pred_check_branch
      %147 = sbr.rel (0) target = $region21
    $region20: #{tpu_custom_call.1} parent=1 // pred_region
      %s149 = ssub.s32 32, 32
      %150 = vsyncadd [#allocation4], %s149
      %s152 = sshll.u32 [#allocation7], 4
      %s153 = int_to_ptr.vmem [resolvable:$true] %s152
      %155 = dma.vmem_to_hbm [thread:$0]  %s153, 32, %s2, [#allocation4]
    $region21: #{tpu_custom_call.1} parent=1 // pred_fallthru
      _
    // Predicated region
    $region22: #{tpu_custom_call.1} parent=1 // pred_check
      _
    $region23: #{tpu_custom_call.1} parent=1 // pred_check_branch
      %157 = sbr.rel (0) target = $region25
    $region24: #{tpu_custom_call.1} parent=1 // pred_region
      %158 = dma.done [#allocation4], 32
    $region25: #{tpu_custom_call.1} parent=1 // pred_fallthru
      _
    %159 = vsyncpa [#allocation3], 1
    %160 = vsyncpa [#allocation6], 1
    %161 = vsyncpa [#allocation4], 1

</llo_original>
